<compile_context>
chip_gen: v5e
topology: v5e:2x2
jax: 0.10.0
libtpu: 0.0.40
codegen_flags: <defaults>
</compile_context>

<pallas_src>
import jax
import jax.numpy as jnp
from jax.experimental import pallas as pl
from jax.experimental.pallas import tpu as pltpu

SIMNORM_DIM = 8      # group size fixed by the module (self.dim = 8)
LANES = 128          # lane-dense row width (multiple of 8 -> groups stay in-row)
TILE_ROWS = 4096     # 4096 * 128 * 4B = 2 MiB f32 per pipeline buffer


def simnorm_kernel(x_ref, bcast_ref, gsum_ref, o_ref):
    """Group-of-8 softmax on a lane-dense (tile_rows, 128) slab."""
    x = x_ref[...].astype(jnp.float32)
    c = x.shape[-1]

    # (1) Per-group max: 3 lane-rolls (XLU).  After the loop the group-leader
    #     lane 8j holds max(x[8j:8j+8]); other lanes hold cross-group junk
    #     that is zeroed out by bcast_ref's zero rows in the next matmul.
    m = x
    for k in (1, 2, 4):
        m = jnp.maximum(m, pltpu.roll(m, c - k, axis=1))   # m[i] = max(m[i], m[i+k])

    # (2) Broadcast the leader value to all 8 lanes of its group on the MXU.
    #     bf16 rounding of the subtracted shift is exactly cancelled by the
    #     softmax's shift invariance.
    m_b = jnp.dot(m.astype(jnp.bfloat16), bcast_ref[...],
                  preferred_element_type=jnp.float32)

    e = jnp.exp(x - m_b)                                    # EUP

    # (3) Per-group sum, broadcast to all lanes of the group, on the MXU
    #     (block-diagonal ones matrix, f32 accumulation).
    s = jnp.dot(e.astype(jnp.bfloat16), gsum_ref[...],
                preferred_element_type=jnp.float32)

    # (4) Normalize; approx reciprocal runs on the EUP slot.
    o_ref[...] = (e * pl.reciprocal(s, approx=True)).astype(o_ref.dtype)


def simnorm(x, *, tile_rows=TILE_ROWS):
    """SimNorm forward: softmax within consecutive groups of 8 along the last dim."""
    shp = x.shape
    feat = shp[-1]
    assert feat % SIMNORM_DIM == 0, "last dim must be divisible by 8"

    total = x.size
    # Lane-dense repack: groups of 8 are contiguous in row-major order and
    # LANES is a multiple of 8, so each group stays inside one row.
    rows = pl.cdiv(total, LANES)
    padded_total = rows * LANES

    flat = x.reshape(-1)
    if padded_total != total:
        # TODO(synk): this zero-pad is a wrapper-side HBM copy; it only
        # triggers when total % 128 != 0 (pad groups softmax to 1/8, dropped).
        flat = jnp.pad(flat, (0, padded_total - total))
    x2d = flat.reshape(rows, LANES)

    # Whole-array block for small inputs (any row count allowed when the
    # block equals the full array); otherwise 8-aligned tiles with a ragged
    # last block (row-independent math, OOB rows are dropped on writeback).
    tr = rows if rows <= tile_rows else tile_rows
    grid = pl.cdiv(rows, tr)

    # Constant (128,128) matrices driving the MXU group reductions.
    lane = jnp.arange(LANES, dtype=jnp.int32)
    same_group = (lane[:, None] // SIMNORM_DIM) == (lane[None, :] // SIMNORM_DIM)
    gsum_mat = same_group.astype(jnp.bfloat16)                                   # block-diag ones
    bcast_mat = (same_group & ((lane[:, None] % SIMNORM_DIM) == 0)).astype(jnp.bfloat16)

    out2d = pl.pallas_call(
        simnorm_kernel,
        out_shape=jax.ShapeDtypeStruct((rows, LANES), x.dtype),
        grid_spec=pltpu.PrefetchScalarGridSpec(
            num_scalar_prefetch=0,
            grid=(grid,),
            in_specs=[
                pl.BlockSpec((tr, LANES), lambda i: (i, 0)),
                pl.BlockSpec((LANES, LANES), lambda i: (0, 0)),   # loaded once
                pl.BlockSpec((LANES, LANES), lambda i: (0, 0)),   # loaded once
            ],
            out_specs=pl.BlockSpec((tr, LANES), lambda i: (i, 0)),
        ),
        compiler_params=pltpu.CompilerParams(
            dimension_semantics=("parallel",),
            vmem_limit_bytes=48 * 1024 * 1024,
        ),
    )(x2d, bcast_mat, gsum_mat)

    if padded_total != total:
        return out2d.reshape(-1)[:total].reshape(shp)
    return out2d.reshape(shp)


def simnorm_ref(x):
    shp = x.shape
    xg = x.reshape(*shp[:-1], -1, SIMNORM_DIM)
    return jax.nn.softmax(xg.astype(jnp.float32), axis=-1).astype(x.dtype).reshape(shp)


if __name__ == "__main__":
    key = jax.random.PRNGKey(0)

    # Small MLP-hidden-like activation: (batch, seq, hidden); single block path.
    x = jax.random.normal(key, (2, 8, 32), dtype=jnp.float32)
    y = jax.block_until_ready(simnorm(x))
    y_ref = simnorm_ref(x)
    assert y.shape == x.shape
    assert jnp.allclose(y, y_ref, atol=1e-2, rtol=1e-2)
    assert jnp.allclose(y.reshape(-1, SIMNORM_DIM).sum(-1), 1.0, atol=1e-2)

    # Larger activation with a non-multiple-of-128 feature dim.
    x2 = jax.random.normal(jax.random.PRNGKey(1), (8, 40, 1032), dtype=jnp.float32)
    y2 = jax.block_until_ready(simnorm(x2))
    y2_ref = simnorm_ref(x2)
    assert y2.shape == x2.shape
    assert jnp.allclose(y2, y2_ref, atol=1e-2, rtol=1e-2)
    assert jnp.allclose(y2.reshape(-1, SIMNORM_DIM).sum(-1), 1.0, atol=1e-2)

    # Force the multi-tile grid with a ragged last row-block.
    y3 = jax.block_until_ready(simnorm(x2, tile_rows=1024))
    assert jnp.allclose(y3, y2_ref, atol=1e-2, rtol=1e-2)

    # bf16 activations exercise the cast paths.
    x4 = jax.random.normal(jax.random.PRNGKey(2), (4, 16, 64), dtype=jnp.bfloat16)
    y4 = jax.block_until_ready(simnorm(x4))
    assert y4.dtype == x4.dtype
    assert jnp.allclose(y4.astype(jnp.float32), simnorm_ref(x4).astype(jnp.float32),
                        atol=2e-2, rtol=2e-2)

    print("KERNEL_OK")
</pallas_src>

<mosaic_0001>
module attributes {stable_mosaic.version = 11 : i64} {
  func.func @simnorm_kernel(%arg0: i32, %arg1: memref<4x128xf32, #tpu.memory_space<vmem>>, %arg2: memref<128x128xbf16, #tpu.memory_space<vmem>>, %arg3: memref<128x128xbf16, #tpu.memory_space<vmem>>, %arg4: memref<4x128xf32, #tpu.memory_space<vmem>>) attributes {dimension_semantics = [#tpu.dimension_semantics<parallel>], iteration_bounds = array<i64: 1>, scalar_prefetch = 0 : i64, scratch_operands = 0 : i64, tpu.core_type = #tpu.core_type<tc>, window_params = [{transform_indices = @transform_0, window_bounds = array<i64: 4, 128>}, {pipeline_mode = #tpu.pipeline_mode<synchronous>, transform_indices = @transform_1, window_bounds = array<i64: 128, 128>}, {pipeline_mode = #tpu.pipeline_mode<synchronous>, transform_indices = @transform_2, window_bounds = array<i64: 128, 128>}, {transform_indices = @transform_3, window_bounds = array<i64: 4, 128>}]} {
    %c0 = arith.constant 0 : index
    %c0_0 = arith.constant 0 : index
    %0 = vector.load %arg1[%c0, %c0_0] : memref<4x128xf32, #tpu.memory_space<vmem>>, vector<4x128xf32>
    %c127_i32 = arith.constant 127 : i32
    %1 = tpu.dynamic_rotate %0 by %c127_i32 dim 1 : vector<4x128xf32>, i32 -> vector<4x128xf32>
    %2 = arith.maximumf %0, %1 : vector<4x128xf32>
    %c126_i32 = arith.constant 126 : i32
    %3 = tpu.dynamic_rotate %2 by %c126_i32 dim 1 : vector<4x128xf32>, i32 -> vector<4x128xf32>
    %4 = arith.maximumf %2, %3 : vector<4x128xf32>
    %c124_i32 = arith.constant 124 : i32
    %5 = tpu.dynamic_rotate %4 by %c124_i32 dim 1 : vector<4x128xf32>, i32 -> vector<4x128xf32>
    %6 = arith.maximumf %4, %5 : vector<4x128xf32>
    %7 = arith.truncf %6 : vector<4x128xf32> to vector<4x128xbf16>
    %c0_1 = arith.constant 0 : index
    %c0_2 = arith.constant 0 : index
    %8 = vector.load %arg2[%c0_1, %c0_2] : memref<128x128xbf16, #tpu.memory_space<vmem>>, vector<128x128xbf16>
    %cst = arith.constant dense<0.000000e+00> : vector<4x128xf32>
    %9 = tpu.matmul %7, %8, %cst {dimension_numbers = #tpu.dot_dimension_numbers<[1], [0], [0], [1], [0, 0, 1, 1], [], []>} : vector<4x128xbf16>, vector<128x128xbf16>, vector<4x128xf32> -> vector<4x128xf32>
    %10 = arith.subf %0, %9 : vector<4x128xf32>
    %11 = math.exp %10 : vector<4x128xf32>
    %12 = arith.truncf %11 : vector<4x128xf32> to vector<4x128xbf16>
    %c0_3 = arith.constant 0 : index
    %c0_4 = arith.constant 0 : index
    %13 = vector.load %arg3[%c0_3, %c0_4] : memref<128x128xbf16, #tpu.memory_space<vmem>>, vector<128x128xbf16>
    %cst_5 = arith.constant dense<0.000000e+00> : vector<4x128xf32>
    %14 = tpu.matmul %12, %13, %cst_5 {dimension_numbers = #tpu.dot_dimension_numbers<[1], [0], [0], [1], [0, 0, 1, 1], [], []>} : vector<4x128xbf16>, vector<128x128xbf16>, vector<4x128xf32> -> vector<4x128xf32>
    %15 = tpu.reciprocal %14 {approx = true} : vector<4x128xf32> -> vector<4x128xf32>
    %16 = arith.mulf %11, %15 : vector<4x128xf32>
    %c0_6 = arith.constant 0 : index
    %c0_7 = arith.constant 0 : index
    %17 = vector.load %arg4[%c0_6, %c0_7] : memref<4x128xf32, #tpu.memory_space<vmem>>, vector<4x128xf32>
    tpu.vector_store %arg4[%c0_6, %c0_7], %16 {strides = array<i32>} : memref<4x128xf32, #tpu.memory_space<vmem>>, vector<4x128xf32>,
    return
  }
  func.func @transform_0(%arg0: i32) -> (i32, i32) {
    %c0_i32 = arith.constant 0 : i32
    %c0_i32_0 = arith.constant 0 : i32
    return %arg0, %c0_i32 : i32, i32
  }
  func.func @transform_1(%arg0: i32) -> (i32, i32) {
    %c0_i32 = arith.constant 0 : i32
    %c0_i32_0 = arith.constant 0 : i32
    %c0_i32_1 = arith.constant 0 : i32
    return %c0_i32, %c0_i32_0 : i32, i32
  }
  func.func @transform_2(%arg0: i32) -> (i32, i32) {
    %c0_i32 = arith.constant 0 : i32
    %c0_i32_0 = arith.constant 0 : i32
    %c0_i32_1 = arith.constant 0 : i32
    return %c0_i32, %c0_i32_0 : i32, i32
  }
  func.func @transform_3(%arg0: i32) -> (i32, i32) {
    %c0_i32 = arith.constant 0 : i32
    %c0_i32_0 = arith.constant 0 : i32
    return %arg0, %c0_i32 : i32, i32
  }
}

</mosaic_0001>

<llo_original>
// kernel: tpu_custom_call.1
$region0: #{tpu_custom_call.1}
  #allocation0 [shape = 'u32[]', space=smem, size = 0x4, offset = 0x4, fixed_abs, tag = 'smem constant byte address 0x4 - core index']
  #allocation1 [shape = 'u32[72,128]{1,0:T(1,128)}', space=vmem, size = 0x9000, scoped, tag = 'internal scratch']
  %s0 = inlined_call_operand.hbm [shape: f32[4,128], index: 0, kind: input, shape index: {}]
  %s1 = inlined_call_operand.hbm [shape: bf16[128,128], index: 1, kind: input, shape index: {}]
  %s2 = inlined_call_operand.hbm [shape: bf16[128,128], index: 2, kind: input, shape index: {}]
  %s3 = inlined_call_operand.hbm [shape: f32[4,128], index: 3, kind: output, shape index: {}]
  %s4 = sld [smem:[#allocation0]]
  $region34: #{tpu_custom_call.1} parent=0
    _
  %s6 = ssub.s32 1, %s4
  %s7 = scalar_select 0, %s6, %s4
  $region1: #{tpu_custom_call.1} parent=0
    #allocation2 [shape = 'u8[2048]{0}', space=vmem, size = 0x800, scoped, tag = 'input window, operand 0, single buffered']
    #allocation3 [shape = 's32[1]{0}', space=sflag, size = 0x4, scoped, tag = 'scoped memory for tpu_custom_call.1']
    #allocation4 [shape = 's32[1]{0}', space=sflag, size = 0x4, scoped, tag = 'scoped memory for tpu_custom_call.1']
    #allocation5 [shape = 'u8[32768]{0}', space=vmem, size = 0x8000, scoped, tag = 'input window, operand 1, single buffered']
    #allocation6 [shape = 's32[1]{0}', space=sflag, size = 0x4, scoped, tag = 'scoped memory for tpu_custom_call.1']
    #allocation7 [shape = 'u8[32768]{0}', space=vmem, size = 0x8000, scoped, tag = 'input window, operand 2, single buffered']
    #allocation8 [shape = 'u8[2048]{0}', space=vmem, size = 0x800, scoped, tag = 'output window, operand 0, single buffered']
    %8 = vsyncpa [#allocation3], 0
    %9 = vsyncpa [#allocation6], 0
    %10 = vsyncpa [#allocation4], 0
    // Predicated region
    $region2: #{tpu_custom_call.1} parent=1 // pred_check
      _
    $region3: #{tpu_custom_call.1} parent=1 // pred_check_branch
      %12 = sbr.rel (0) target = $region5
    $region4: #{tpu_custom_call.1} parent=1 // pred_region
      %14 = vsyncadd [#allocation3], 0
      %s16 = sshll.u32 %s0, 4
      %s17 = int_to_ptr.hbm [resolvable:$true] %s16
      %s18 = sshll.u32 [#allocation2], 4
      %s19 = int_to_ptr.vmem [resolvable:$true] %s18
      %21 = dma.hbm_to_vmem [thread:$0]  %s17, 64, %s19, [#allocation3]
    $region5: #{tpu_custom_call.1} parent=1 // pred_fallthru
      _
    // Predicated region
    $region6: #{tpu_custom_call.1} parent=1 // pred_check
      _
    $region7: #{tpu_custom_call.1} parent=1 // pred_check_branch
      %23 = sbr.rel (0) target = $region9
    $region8: #{tpu_custom_call.1} parent=1 // pred_region
      %25 = vsyncadd [#allocation6], 0
      %s26 = sshll.u32 %s1, 4
      %s27 = int_to_ptr.hbm [resolvable:$true] %s26
      %s28 = sshll.u32 [#allocation5], 4
      %s29 = int_to_ptr.vmem [resolvable:$true] %s28
      %34 = dma.hbm_to_vmem [thread:$0]  %s27, 1024, %s29, [#allocation6], 64, 64, 4
    $region9: #{tpu_custom_call.1} parent=1 // pred_fallthru
      _
    // Predicated region
    $region10: #{tpu_custom_call.1} parent=1 // pred_check
      _
    $region11: #{tpu_custom_call.1} parent=1 // pred_check_branch
      %36 = sbr.rel (0) target = $region13
    $region12: #{tpu_custom_call.1} parent=1 // pred_region
      %38 = vsyncadd [#allocation6], 0
      %s39 = sshll.u32 %s2, 4
      %s40 = int_to_ptr.hbm [resolvable:$true] %s39
      %s41 = sshll.u32 [#allocation7], 4
      %s42 = int_to_ptr.vmem [resolvable:$true] %s41
      %47 = dma.hbm_to_vmem [thread:$0]  %s40, 1024, %s42, [#allocation6], 64, 64, 4
    $region13: #{tpu_custom_call.1} parent=1 // pred_fallthru
      _
    // Predicated region
    $region14: #{tpu_custom_call.1} parent=1 // pred_check
      _
    $region15: #{tpu_custom_call.1} parent=1 // pred_check_branch
      %49 = sbr.rel (0) target = $region17
    $region16: #{tpu_custom_call.1} parent=1 // pred_region
      %51 = dma.done [#allocation3], 64
    $region17: #{tpu_custom_call.1} parent=1 // pred_fallthru
      _
    // Predicated region
    $region18: #{tpu_custom_call.1} parent=1 // pred_check
      _
    $region19: #{tpu_custom_call.1} parent=1 // pred_check_branch
      %53 = sbr.rel (0) target = $region21
    $region20: #{tpu_custom_call.1} parent=1 // pred_region
      %55 = dma.done [#allocation6], 1024
    $region21: #{tpu_custom_call.1} parent=1 // pred_fallthru
      _
    // Predicated region
    $region22: #{tpu_custom_call.1} parent=1 // pred_check
      _
    $region23: #{tpu_custom_call.1} parent=1 // pred_check_branch
      %57 = sbr.rel (0) target = $region25
    $region24: #{tpu_custom_call.1} parent=1 // pred_region
      %59 = dma.done [#allocation6], 1024
    $region25: #{tpu_custom_call.1} parent=1 // pred_fallthru
      _
    %v60 = vld [vmem:[#allocation2] sm:$0xf]
    %61 = vrot.lane.b32.xlu0 %v60, 127
    %v62 = vpop.permute.xlu0 %61
    %v63 = vmax.f32 %v60, %v62
    %64 = vrot.lane.b32.xlu0 %v63, 126
    %v65 = vpop.permute.xlu0 %64
    %v66 = vmax.f32 %v63, %v65
    %67 = vrot.lane.b32.xlu0 %v66, 124
    %v68 = vpop.permute.xlu0 %67
    %v69 = vmax.f32 %v66, %v68
    %v70 = vpack.c.bf16 %v69, %v69
    %v71 = vld [vmem:[#allocation5] sm:$0xf]
    %v72 = vld [vmem:[#allocation5 + $0x4] sm:$0xf]
    %v73 = vld [vmem:[#allocation5 + $0x8] sm:$0xf]
    %v74 = vld [vmem:[#allocation5 + $0xc] sm:$0xf]
    %v75 = vld [vmem:[#allocation5 + $0x10] sm:$0xf]
    %v76 = vld [vmem:[#allocation5 + $0x14] sm:$0xf]
    %v77 = vld [vmem:[#allocation5 + $0x18] sm:$0xf]
    %v78 = vld [vmem:[#allocation5 + $0x1c] sm:$0xf]
    %v79 = vld [vmem:[#allocation5 + $0x20] sm:$0xf]
    %v80 = vld [vmem:[#allocation5 + $0x24] sm:$0xf]
    %v81 = vld [vmem:[#allocation5 + $0x28] sm:$0xf]
    %v82 = vld [vmem:[#allocation5 + $0x2c] sm:$0xf]
    %v83 = vld [vmem:[#allocation5 + $0x30] sm:$0xf]
    %v84 = vld [vmem:[#allocation5 + $0x34] sm:$0xf]
    %v85 = vld [vmem:[#allocation5 + $0x38] sm:$0xf]
    %v86 = vld [vmem:[#allocation5 + $0x3c] sm:$0xf]
    %v103 = vunpack.c.l.b16 %v71
    %v104 = vunpack.c.l.b16 %v72
    %v105 = vunpack.c.l.b16 %v73
    %v106 = vunpack.c.l.b16 %v74
    %v107 = vunpack.c.l.b16 %v75
    %v108 = vunpack.c.l.b16 %v76
    %v109 = vunpack.c.l.b16 %v77
    %v110 = vunpack.c.l.b16 %v78
    %v111 = vunpack.c.l.b16 %v79
    %v112 = vunpack.c.l.b16 %v80
    %v113 = vunpack.c.l.b16 %v81
    %v114 = vunpack.c.l.b16 %v82
    %v115 = vunpack.c.l.b16 %v83
    %v116 = vunpack.c.l.b16 %v84
    %v117 = vunpack.c.l.b16 %v85
    %v118 = vunpack.c.l.b16 %v86
    %v119 = vpack.c.b16 %v104, %v103
    %v120 = vpack.c.b16 %v106, %v105
    %v121 = vpack.c.b16 %v108, %v107
    %v122 = vpack.c.b16 %v110, %v109
    %v123 = vpack.c.b16 %v112, %v111
    %v124 = vpack.c.b16 %v114, %v113
    %v125 = vpack.c.b16 %v116, %v115
    %v126 = vpack.c.b16 %v118, %v117
    %135 = vmatpush.bf16.msra.mxu0 %v126
    %136 = vmatpush.bf16.msra.mxu0 %v125
    %137 = vmatpush.bf16.msra.mxu0 %v124
    %138 = vmatpush.bf16.msra.mxu0 %v123
    %139 = vmatpush.bf16.msra.mxu0 %v122
    %140 = vmatpush.bf16.msra.mxu0 %v121
    %141 = vmatpush.bf16.msra.mxu0 %v120
    %142 = vmatpush.bf16.msra.mxu0 %v119
    %143 = vmatmul.bf16.gmra.mxu0 %v70
    %v144 = vpop.f32.mrf.mxu0
    %v145 = vadd.f32 0.0, %v144
    %v146 = vpop.f32.mrf.mxu0
    %147 = vdwg.mxu0
    %v148 = vsub.f32 %v60, %v145
    %v149 = vmul.f32 %v148, 1.442695
    %v150 = vpow.pop %v149
    %v151 = vpack.c.bf16 %v150, %v150
    %v152 = vld [vmem:[#allocation7] sm:$0xf]
    %v153 = vld [vmem:[#allocation7 + $0x4] sm:$0xf]
    %v154 = vld [vmem:[#allocation7 + $0x8] sm:$0xf]
    %v155 = vld [vmem:[#allocation7 + $0xc] sm:$0xf]
    %v156 = vld [vmem:[#allocation7 + $0x10] sm:$0xf]
    %v157 = vld [vmem:[#allocation7 + $0x14] sm:$0xf]
    %v158 = vld [vmem:[#allocation7 + $0x18] sm:$0xf]
    %v159 = vld [vmem:[#allocation7 + $0x1c] sm:$0xf]
    %v160 = vld [vmem:[#allocation7 + $0x20] sm:$0xf]
    %v161 = vld [vmem:[#allocation7 + $0x24] sm:$0xf]
    %v162 = vld [vmem:[#allocation7 + $0x28] sm:$0xf]
    %v163 = vld [vmem:[#allocation7 + $0x2c] sm:$0xf]
    %v164 = vld [vmem:[#allocation7 + $0x30] sm:$0xf]
    %v165 = vld [vmem:[#allocation7 + $0x34] sm:$0xf]
    %v166 = vld [vmem:[#allocation7 + $0x38] sm:$0xf]
    %v167 = vld [vmem:[#allocation7 + $0x3c] sm:$0xf]
    %v184 = vunpack.c.l.b16 %v152
    %v185 = vunpack.c.l.b16 %v153
    %v186 = vunpack.c.l.b16 %v154
    %v187 = vunpack.c.l.b16 %v155
    %v188 = vunpack.c.l.b16 %v156
    %v189 = vunpack.c.l.b16 %v157
    %v190 = vunpack.c.l.b16 %v158
    %v191 = vunpack.c.l.b16 %v159
    %v192 = vunpack.c.l.b16 %v160
    %v193 = vunpack.c.l.b16 %v161
    %v194 = vunpack.c.l.b16 %v162
    %v195 = vunpack.c.l.b16 %v163
    %v196 = vunpack.c.l.b16 %v164
    %v197 = vunpack.c.l.b16 %v165
    %v198 = vunpack.c.l.b16 %v166
    %v199 = vunpack.c.l.b16 %v167
    %v200 = vpack.c.b16 %v185, %v184
    %v201 = vpack.c.b16 %v187, %v186
    %v202 = vpack.c.b16 %v189, %v188
    %v203 = vpack.c.b16 %v191, %v190
    %v204 = vpack.c.b16 %v193, %v192
    %v205 = vpack.c.b16 %v195, %v194
    %v206 = vpack.c.b16 %v197, %v196
    %v207 = vpack.c.b16 %v199, %v198
    %216 = vmatpush.bf16.msra.mxu0 %v207
    %217 = vmatpush.bf16.msra.mxu0 %v206
    %218 = vmatpush.bf16.msra.mxu0 %v205
    %219 = vmatpush.bf16.msra.mxu0 %v204
    %220 = vmatpush.bf16.msra.mxu0 %v203
    %221 = vmatpush.bf16.msra.mxu0 %v202
    %222 = vmatpush.bf16.msra.mxu0 %v201
    %223 = vmatpush.bf16.msra.mxu0 %v200
    %224 = vmatmul.bf16.gmra.mxu0 %v151
    %v225 = vpop.f32.mrf.mxu0
    %v226 = vadd.f32 0.0, %v225
    %v227 = vpop.f32.mrf.mxu0
    %228 = vdwg.mxu0
    %v229 = vrcp.pop %v226
    %v230 = vmul.f32 %v150, %v229
    %231 = vst [vmem:[#allocation8] sm:$0xf] %v230
    // Predicated region
    $region26: #{tpu_custom_call.1} parent=1 // pred_check
      _
    $region27: #{tpu_custom_call.1} parent=1 // pred_check_branch
      %233 = sbr.rel (0) target = $region29
    $region28: #{tpu_custom_call.1} parent=1 // pred_region
      %235 = vsyncadd [#allocation4], 0
      %s237 = sshll.u32 [#allocation8], 4
      %s238 = int_to_ptr.vmem [resolvable:$true] %s237
      %s239 = sshll.u32 %s3, 4
      %s240 = int_to_ptr.hbm [resolvable:$true] %s239
      %242 = dma.vmem_to_hbm [thread:$0]  %s238, 64, %s240, [#allocation4]
    $region29: #{tpu_custom_call.1} parent=1 // pred_fallthru
      _
    // Predicated region
    $region30: #{tpu_custom_call.1} parent=1 // pred_check
      _
    $region31: #{tpu_custom_call.1} parent=1 // pred_check_branch
      %244 = sbr.rel (0) target = $region33
    $region32: #{tpu_custom_call.1} parent=1 // pred_region
      %246 = dma.done [#allocation4], 64
    $region33: #{tpu_custom_call.1} parent=1 // pred_fallthru
      _
    %247 = vsyncpa [#allocation3], 1
    %248 = vsyncpa [#allocation6], 1
    %249 = vsyncpa [#allocation4], 1

</llo_original>
